<compile_context>
chip_gen: v7x
topology: tpu7x:2x2x1
jax: 0.10.0
libtpu: 0.0.40
codegen_flags: <defaults>
</compile_context>

<pallas_src>
import functools

import jax
import jax.numpy as jnp
from jax.experimental import pallas as pl
from jax.experimental.pallas import tpu as pltpu


def _round_up(x: int, m: int) -> int:
    return ((x + m - 1) // m) * m


def _ipd_kernel(z_rows_ref, z_cols_ref, o_ref, *, tn: int, resident_rhs: bool):
    """One (t, t) output tile of sigmoid(z @ z.T). The latent dim (K) is untiled."""
    za = z_rows_ref[...]                        # (t, D) rows of z for this i-block

    if resident_rhs:
        # Whole (padded) z is VMEM-resident; slice the tn rows for this j-block.
        j = pl.program_id(1)
        start = pl.multiple_of(j * tn, tn)
        zb = z_cols_ref[pl.ds(start, tn), :]    # (tn, D)
    else:
        zb = z_cols_ref[...]                    # (tn, D)

    # Contract on dim 1 of both operands (== za @ zb.T) without an explicit `.T`
    # so the MXU is fed directly (no XLU relayout / extra vreg pressure).
    logits = jax.lax.dot_general(
        za, zb,
        dimension_numbers=(((1,), (1,)), ((), ())),
        preferred_element_type=jnp.float32,
    )
    o_ref[...] = jax.nn.sigmoid(logits).astype(o_ref.dtype)


@functools.partial(jax.jit, static_argnames=("tile",))
def inner_product_decoder(z, *, tile: int = 512):
    """adj = sigmoid(z @ z.T) for z of shape (N, D). Output dtype == z.dtype."""
    assert tile % 128 == 0, "tile must be a multiple of 128 (lane width)"
    N, D = z.shape

    # Square, lane-dense output tiles; clamp to the (padded) problem size so small
    # graphs don't over-pad. Big tiles amortize the ~0.35us/step grid overhead and
    # give unmasked, lane-dense vector stores for the dominant output writeback.
    t = min(tile, _round_up(N, 128))
    n_pad = _round_up(N, t)

    z_p = z if n_pad == N else jnp.zeros((n_pad, D), z.dtype).at[:N, :].set(z)
    grid = (n_pad // t, n_pad // t)

    itemsize = jnp.dtype(z.dtype).itemsize
    # Keep z VMEM-resident (constant index_map -> DMA'd once) when it comfortably
    # fits every generation's scoped VMEM (v7x: 64 MiB physical / 32 MiB default;
    # BlockSpec double-buffers, hence the factor 2). Otherwise tile the rhs rows.
    resident_rhs = 2 * n_pad * D * itemsize <= (8 << 20)
    if resident_rhs:
        rhs_spec = pl.BlockSpec((n_pad, D), lambda i, j: (0, 0))
        rhs_rows = n_pad
    else:
        rhs_spec = pl.BlockSpec((t, D), lambda i, j: (j, 0))
        rhs_rows = t

    # Rough double-buffered VMEM footprint (f32 worst case) + slack; keep the
    # requested limit within what all generations can grant.
    vmem_est = 2 * (t * D + rhs_rows * D + t * t) * 4
    vmem_limit = min(max(vmem_est + (4 << 20), 16 << 20), 32 << 20)

    out = pl.pallas_call(
        functools.partial(_ipd_kernel, tn=t, resident_rhs=resident_rhs),
        out_shape=jax.ShapeDtypeStruct((n_pad, n_pad), z.dtype),
        grid_spec=pltpu.PrefetchScalarGridSpec(
            num_scalar_prefetch=0,
            grid=grid,
            in_specs=[
                pl.BlockSpec((t, D), lambda i, j: (i, 0)),  # rows of z for block i
                rhs_spec,                                   # rows of z for block j (or all of z)
            ],
            out_specs=pl.BlockSpec((t, t), lambda i, j: (i, j)),
        ),
        compiler_params=pltpu.CompilerParams(
            dimension_semantics=("parallel", "parallel"),
            vmem_limit_bytes=vmem_limit,
        ),
    )(z_p, z_p)

    return out if n_pad == N else out[:N, :N]


if __name__ == "__main__":
    key = jax.random.PRNGKey(0)
    # Small VGAE-like shapes: 200 nodes (not a tile multiple -> exercises the
    # padding path), latent dim 32.
    N, D = 200, 32
    z = jax.random.normal(key, (N, D), dtype=jnp.float32)

    adj = inner_product_decoder(z)
    jax.block_until_ready(adj)

    # Reference check against plain JAX.
    ref = jax.nn.sigmoid(z @ z.T)
    assert adj.shape == (N, N)
    assert jnp.allclose(adj, ref, atol=1e-5, rtol=1e-5), "mismatch vs reference"

    print("KERNEL_OK")
</pallas_src>

<mosaic_0001>
module attributes {stable_mosaic.version = 11 : i64} {
  func.func @_ipd_kernel(%arg0: i32, %arg1: i32, %arg2: memref<256x32xf32, #tpu.memory_space<vmem>>, %arg3: memref<256x32xf32, #tpu.memory_space<vmem>>, %arg4: memref<256x256xf32, #tpu.memory_space<vmem>>) attributes {dimension_semantics = [#tpu.dimension_semantics<parallel>, #tpu.dimension_semantics<parallel>], iteration_bounds = array<i64: 1, 1>, scalar_prefetch = 0 : i64, scratch_operands = 0 : i64, tpu.core_type = #tpu.core_type<tc>, window_params = [{transform_indices = @transform_0, window_bounds = array<i64: 256, 32>}, {pipeline_mode = #tpu.pipeline_mode<synchronous>, transform_indices = @transform_1, window_bounds = array<i64: 256, 32>}, {transform_indices = @transform_2, window_bounds = array<i64: 256, 256>}]} {
    %c0 = arith.constant 0 : index
    %c0_0 = arith.constant 0 : index
    %0 = vector.load %arg2[%c0, %c0_0] : memref<256x32xf32, #tpu.memory_space<vmem>>, vector<256x32xf32>
    %c256_i32 = arith.constant 256 : i32
    %1 = arith.muli %arg1, %c256_i32 : i32
    %2 = tpu.assume_multiple %1, 256 : i32
    %3 = arith.index_cast %2 : i32 to index
    %c0_1 = arith.constant 0 : index
    %4 = vector.load %arg3[%3, %c0_1] : memref<256x32xf32, #tpu.memory_space<vmem>>, vector<256x32xf32>
    %cst = arith.constant dense<0.000000e+00> : vector<256x256xf32>
    %5 = tpu.matmul %0, %4, %cst {dimension_numbers = #tpu.dot_dimension_numbers<[1], [1], [0], [0], [0, 0, 1, 0], [], []>} : vector<256x32xf32>, vector<256x32xf32>, vector<256x256xf32> -> vector<256x256xf32>
    %6 = arith.negf %5 : vector<256x256xf32>
    %7 = math.exp %6 : vector<256x256xf32>
    %cst_2 = arith.constant 1.000000e+00 : f32
    %8 = vector.broadcast %cst_2 : f32 to vector<256x256xf32>
    %9 = arith.addf %8, %7 : vector<256x256xf32>
    %10 = arith.divf %8, %9 : vector<256x256xf32>
    %c0_3 = arith.constant 0 : index
    %c0_4 = arith.constant 0 : index
    %11 = vector.load %arg4[%c0_3, %c0_4] : memref<256x256xf32, #tpu.memory_space<vmem>>, vector<256x256xf32>
    tpu.vector_store %arg4[%c0_3, %c0_4], %10 {strides = array<i32>} : memref<256x256xf32, #tpu.memory_space<vmem>>, vector<256x256xf32>,
    return
  }
  func.func @transform_0(%arg0: i32, %arg1: i32) -> (i32, i32) {
    %c0_i32 = arith.constant 0 : i32
    %c0_i32_0 = arith.constant 0 : i32
    return %arg0, %c0_i32 : i32, i32
  }
  func.func @transform_1(%arg0: i32, %arg1: i32) -> (i32, i32) {
    %c0_i32 = arith.constant 0 : i32
    %c0_i32_0 = arith.constant 0 : i32
    %c0_i32_1 = arith.constant 0 : i32
    return %c0_i32, %c0_i32_0 : i32, i32
  }
  func.func @transform_2(%arg0: i32, %arg1: i32) -> (i32, i32) {
    %c0_i32 = arith.constant 0 : i32
    return %arg0, %arg1 : i32, i32
  }
}

</mosaic_0001>

<llo_original>
// kernel: inner_product_decoder.1
$region0: #{inner_product_decoder.1}
  #allocation0 [shape = 'u32[]', space=smem, size = 0x4, offset = 0x4, fixed_abs, tag = 'smem constant byte address 0x4 - core index']
  #allocation1 [shape = 'u32[144,128]{1,0:T(1,128)}', space=vmem, size = 0x12000, scoped, tag = 'internal scratch']
  %s0 = inlined_call_operand.vmem [shape: f32[256,32], index: 0, kind: input, shape index: {}, may-alias: {0,1}]
  %s1 = inlined_call_operand.vmem [shape: f32[256,32], index: 1, kind: input, shape index: {}, may-alias: {0,1}]
  %s2 = inlined_call_operand.vmem [shape: f32[256,256], index: 2, kind: output, shape index: {}]
  %s3 = sld [smem:[#allocation0]]
  $region18: #{inner_product_decoder.1} parent=0
    _
  %s5 = ssub.s32 1, %s3
  %s6 = scalar_select 0, %s5, %s3
  // Predicated region
  $region2: #{inner_product_decoder.1} parent=0 // pred_check
    _
  $region3: #{inner_product_decoder.1} parent=0 // pred_check_branch
    %8 = sbr.rel (0) target = $region5
  $region4: #{inner_product_decoder.1} parent=0 // pred_region
    _
  $region5: #{inner_product_decoder.1} parent=0 // pred_fallthru
    _
  // Predicated region
  $region6: #{inner_product_decoder.1} parent=0 // pred_check
    _
  $region7: #{inner_product_decoder.1} parent=0 // pred_check_branch
    %10 = sbr.rel (0) target = $region9
  $region8: #{inner_product_decoder.1} parent=0 // pred_region
    _
  $region9: #{inner_product_decoder.1} parent=0 // pred_fallthru
    _
  %v11 = vld [vmem:[%s0] sm:$0xff]
  %v12 = vld [vmem:[%s0 + $0x8] sm:$0xff]
  %v13 = vld [vmem:[%s0 + $0x10] sm:$0xff]
  %v14 = vld [vmem:[%s0 + $0x18] sm:$0xff]
  %v15 = vld [vmem:[%s0 + $0x20] sm:$0xff]
  %v16 = vld [vmem:[%s0 + $0x28] sm:$0xff]
  %v17 = vld [vmem:[%s0 + $0x30] sm:$0xff]
  %v18 = vld [vmem:[%s0 + $0x38] sm:$0xff]
  %v19 = vld [vmem:[%s0 + $0x40] sm:$0xff]
  %v20 = vld [vmem:[%s0 + $0x48] sm:$0xff]
  %v21 = vld [vmem:[%s0 + $0x50] sm:$0xff]
  %v22 = vld [vmem:[%s0 + $0x58] sm:$0xff]
  %v23 = vld [vmem:[%s0 + $0x60] sm:$0xff]
  %v24 = vld [vmem:[%s0 + $0x68] sm:$0xff]
  %v25 = vld [vmem:[%s0 + $0x70] sm:$0xff]
  %v26 = vld [vmem:[%s0 + $0x78] sm:$0xff]
  %v27 = vld [vmem:[%s0 + $0x80] sm:$0xff]
  %v28 = vld [vmem:[%s0 + $0x88] sm:$0xff]
  %v29 = vld [vmem:[%s0 + $0x90] sm:$0xff]
  %v30 = vld [vmem:[%s0 + $0x98] sm:$0xff]
  %v31 = vld [vmem:[%s0 + $0xa0] sm:$0xff]
  %v32 = vld [vmem:[%s0 + $0xa8] sm:$0xff]
  %v33 = vld [vmem:[%s0 + $0xb0] sm:$0xff]
  %v34 = vld [vmem:[%s0 + $0xb8] sm:$0xff]
  %v35 = vld [vmem:[%s0 + $0xc0] sm:$0xff]
  %v36 = vld [vmem:[%s0 + $0xc8] sm:$0xff]
  %v37 = vld [vmem:[%s0 + $0xd0] sm:$0xff]
  %v38 = vld [vmem:[%s0 + $0xd8] sm:$0xff]
  %v39 = vld [vmem:[%s0 + $0xe0] sm:$0xff]
  %v40 = vld [vmem:[%s0 + $0xe8] sm:$0xff]
  %v41 = vld [vmem:[%s0 + $0xf0] sm:$0xff]
  %v42 = vld [vmem:[%s0 + $0xf8] sm:$0xff]
  %s43 = smul.u32 0, 256
  %s44 = scalar_lea.vmem %s1, %s43
  %v45 = vld [vmem:[%s44] sm:$0xff]
  %v46 = vld [vmem:[%s44 + $0x8] sm:$0xff]
  %v47 = vld [vmem:[%s44 + $0x10] sm:$0xff]
  %v48 = vld [vmem:[%s44 + $0x18] sm:$0xff]
  %v49 = vld [vmem:[%s44 + $0x20] sm:$0xff]
  %v50 = vld [vmem:[%s44 + $0x28] sm:$0xff]
  %v51 = vld [vmem:[%s44 + $0x30] sm:$0xff]
  %v52 = vld [vmem:[%s44 + $0x38] sm:$0xff]
  %v53 = vld [vmem:[%s44 + $0x40] sm:$0xff]
  %v54 = vld [vmem:[%s44 + $0x48] sm:$0xff]
  %v55 = vld [vmem:[%s44 + $0x50] sm:$0xff]
  %v56 = vld [vmem:[%s44 + $0x58] sm:$0xff]
  %v57 = vld [vmem:[%s44 + $0x60] sm:$0xff]
  %v58 = vld [vmem:[%s44 + $0x68] sm:$0xff]
  %v59 = vld [vmem:[%s44 + $0x70] sm:$0xff]
  %v60 = vld [vmem:[%s44 + $0x78] sm:$0xff]
  %v61 = vld [vmem:[%s44 + $0x80] sm:$0xff]
  %v62 = vld [vmem:[%s44 + $0x88] sm:$0xff]
  %v63 = vld [vmem:[%s44 + $0x90] sm:$0xff]
  %v64 = vld [vmem:[%s44 + $0x98] sm:$0xff]
  %v65 = vld [vmem:[%s44 + $0xa0] sm:$0xff]
  %v66 = vld [vmem:[%s44 + $0xa8] sm:$0xff]
  %v67 = vld [vmem:[%s44 + $0xb0] sm:$0xff]
  %v68 = vld [vmem:[%s44 + $0xb8] sm:$0xff]
  %v69 = vld [vmem:[%s44 + $0xc0] sm:$0xff]
  %v70 = vld [vmem:[%s44 + $0xc8] sm:$0xff]
  %v71 = vld [vmem:[%s44 + $0xd0] sm:$0xff]
  %v72 = vld [vmem:[%s44 + $0xd8] sm:$0xff]
  %v73 = vld [vmem:[%s44 + $0xe0] sm:$0xff]
  %v74 = vld [vmem:[%s44 + $0xe8] sm:$0xff]
  %v75 = vld [vmem:[%s44 + $0xf0] sm:$0xff]
  %v76 = vld [vmem:[%s44 + $0xf8] sm:$0xff]
  %vm77 = vcmask 261120
  %v79 = vsel %vm77, %v11, 0
  %v82 = vsel %vm77, %v12, 0
  %v85 = vsel %vm77, %v13, 0
  %v88 = vsel %vm77, %v14, 0
  %v91 = vsel %vm77, %v15, 0
  %v94 = vsel %vm77, %v16, 0
  %v97 = vsel %vm77, %v17, 0
  %v100 = vsel %vm77, %v18, 0
  %v103 = vsel %vm77, %v19, 0
  %v106 = vsel %vm77, %v20, 0
  %v109 = vsel %vm77, %v21, 0
  %v112 = vsel %vm77, %v22, 0
  %v115 = vsel %vm77, %v23, 0
  %v118 = vsel %vm77, %v24, 0
  %v121 = vsel %vm77, %v25, 0
  %v124 = vsel %vm77, %v26, 0
  %v127 = vsel %vm77, %v27, 0
  %v130 = vsel %vm77, %v28, 0
  %v133 = vsel %vm77, %v29, 0
  %v136 = vsel %vm77, %v30, 0
  %v139 = vsel %vm77, %v31, 0
  %v142 = vsel %vm77, %v32, 0
  %v145 = vsel %vm77, %v33, 0
  %v148 = vsel %vm77, %v34, 0
  %v151 = vsel %vm77, %v35, 0
  %v154 = vsel %vm77, %v36, 0
  %v157 = vsel %vm77, %v37, 0
  %v160 = vsel %vm77, %v38, 0
  %v163 = vsel %vm77, %v39, 0
  %v166 = vsel %vm77, %v40, 0
  %v169 = vsel %vm77, %v41, 0
  %v172 = vsel %vm77, %v42, 0
  %v175 = vsel %vm77, %v45, 0
  %v178 = vsel %vm77, %v46, 0
  %v181 = vsel %vm77, %v47, 0
  %v184 = vsel %vm77, %v48, 0
  %v187 = vsel %vm77, %v49, 0
  %v190 = vsel %vm77, %v50, 0
  %v193 = vsel %vm77, %v51, 0
  %v196 = vsel %vm77, %v52, 0
  %v199 = vsel %vm77, %v53, 0
  %v202 = vsel %vm77, %v54, 0
  %v205 = vsel %vm77, %v55, 0
  %v208 = vsel %vm77, %v56, 0
  %v211 = vsel %vm77, %v57, 0
  %v214 = vsel %vm77, %v58, 0
  %v217 = vsel %vm77, %v59, 0
  %v220 = vsel %vm77, %v60, 0
  %v223 = vsel %vm77, %v61, 0
  %v226 = vsel %vm77, %v62, 0
  %v229 = vsel %vm77, %v63, 0
  %v232 = vsel %vm77, %v64, 0
  %v235 = vsel %vm77, %v65, 0
  %v238 = vsel %vm77, %v66, 0
  %v241 = vsel %vm77, %v67, 0
  %v244 = vsel %vm77, %v68, 0
  %v247 = vsel %vm77, %v69, 0
  %v250 = vsel %vm77, %v70, 0
  %v253 = vsel %vm77, %v71, 0
  %v256 = vsel %vm77, %v72, 0
  %v259 = vsel %vm77, %v73, 0
  %v262 = vsel %vm77, %v74, 0
  %v265 = vsel %vm77, %v75, 0
  %v268 = vsel %vm77, %v76, 0
  %270 = vmatprep.subr.mxu0 0.0
  %271 = vmatpush1.xpose.msra.mxu0 %v175
  %272 = vmatprep.subr.mxu0 0.0
  %273 = vmatpush1.xpose.msra.mxu0 %v178
  %274 = vmatprep.subr.mxu0 0.0
  %275 = vmatpush1.xpose.msra.mxu0 %v181
  %276 = vmatprep.subr.mxu0 0.0
  %277 = vmatpush1.xpose.msra.mxu0 %v184
  %278 = vmatprep.subr.mxu0 0.0
  %279 = vmatpush1.xpose.msra.mxu0 %v187
  %280 = vmatprep.subr.mxu0 0.0
  %281 = vmatpush1.xpose.msra.mxu0 %v190
  %282 = vmatprep.subr.mxu0 0.0
  %283 = vmatpush1.xpose.msra.mxu0 %v193
  %284 = vmatprep.subr.mxu0 0.0
  %285 = vmatpush1.xpose.msra.mxu0 %v196
  %286 = vmatprep.subr.mxu0 0.0
  %287 = vmatpush1.xpose.msra.mxu0 %v199
  %288 = vmatprep.subr.mxu0 0.0
  %289 = vmatpush1.xpose.msra.mxu0 %v202
  %290 = vmatprep.subr.mxu0 0.0
  %291 = vmatpush1.xpose.msra.mxu0 %v205
  %292 = vmatprep.subr.mxu0 0.0
  %293 = vmatpush1.xpose.msra.mxu0 %v208
  %294 = vmatprep.subr.mxu0 0.0
  %295 = vmatpush1.xpose.msra.mxu0 %v211
  %296 = vmatprep.subr.mxu0 0.0
  %297 = vmatpush1.xpose.msra.mxu0 %v214
  %298 = vmatprep.subr.mxu0 0.0
  %299 = vmatpush1.xpose.msra.mxu0 %v217
  %300 = vmatprep.subr.mxu0 0.0
  %301 = vmatpush1.xpose.msra.mxu0 %v220
  %302 = vmatprep.subr.mxu0 0.0
  %303 = vmatpush1.xpose.msra.mxu0 %v223
  %304 = vmatprep.subr.mxu0 0.0
  %305 = vmatpush1.xpose.msra.mxu0 %v226
  %306 = vmatprep.subr.mxu0 0.0
  %307 = vmatpush1.xpose.msra.mxu0 %v229
  %308 = vmatprep.subr.mxu0 0.0
  %309 = vmatpush1.xpose.msra.mxu0 %v232
  %310 = vmatprep.subr.mxu0 0.0
  %311 = vmatpush1.xpose.msra.mxu0 %v235
  %312 = vmatprep.subr.mxu0 0.0
  %313 = vmatpush1.xpose.msra.mxu0 %v238
  %314 = vmatprep.subr.mxu0 0.0
  %315 = vmatpush1.xpose.msra.mxu0 %v241
  %316 = vmatprep.subr.mxu0 0.0
  %317 = vmatpush1.xpose.msra.mxu0 %v244
  %318 = vmatprep.subr.mxu0 0.0
  %319 = vmatpush1.xpose.msra.mxu0 %v247
  %320 = vmatprep.subr.mxu0 0.0
  %321 = vmatpush1.xpose.msra.mxu0 %v250
  %322 = vmatprep.subr.mxu0 0.0
  %323 = vmatpush1.xpose.msra.mxu0 %v253
  %324 = vmatprep.subr.mxu0 0.0
  %325 = vmatpush1.xpose.msra.mxu0 %v256
  %326 = vmatprep.subr.mxu0 0.0
  %327 = vmatpush1.xpose.msra.mxu0 %v259
  %328 = vmatprep.subr.mxu0 0.0
  %329 = vmatpush1.xpose.msra.mxu0 %v262
  %330 = vmatprep.subr.mxu0 0.0
  %331 = vmatpush1.xpose.msra.mxu0 %v265
  %332 = vmatprep.subr.mxu0 0.0
  %333 = vmatpush1.xpose.msra.mxu0 %v268
  %334 = vmatprep.mubr.f32.mxu0 0.0
  %335 = vmatmul.mubr.f32.gmra.mrb[0].mxu0 %v79
  %v336 = vpop.f32.mrb[0].mxu0
  %v337 = vadd.f32 0.0, %v336
  %v338 = vpop.f32.mrb[0].mxu0
  %v339 = vadd.f32 0.0, %v338
  %340 = vmatprep.mubr.f32.mxu0 0.0
  %341 = vmatmul.mubr.f32.gmra.mrb[0].mxu0 %v82
  %v342 = vpop.f32.mrb[0].mxu0
  %v343 = vadd.f32 0.0, %v342
  %v344 = vpop.f32.mrb[0].mxu0
  %v345 = vadd.f32 0.0, %v344
  %346 = vmatprep.mubr.f32.mxu0 0.0
  %347 = vmatmul.mubr.f32.gmra.mrb[0].mxu0 %v85
  %v348 = vpop.f32.mrb[0].mxu0
  %v349 = vadd.f32 0.0, %v348
  %v350 = vpop.f32.mrb[0].mxu0
  %v351 = vadd.f32 0.0, %v350
  %352 = vmatprep.mubr.f32.mxu0 0.0
  %353 = vmatmul.mubr.f32.gmra.mrb[0].mxu0 %v88
  %v354 = vpop.f32.mrb[0].mxu0
  %v355 = vadd.f32 0.0, %v354
  %v356 = vpop.f32.mrb[0].mxu0
  %v357 = vadd.f32 0.0, %v356
  %358 = vmatprep.mubr.f32.mxu0 0.0
  %359 = vmatmul.mubr.f32.gmra.mrb[0].mxu0 %v91
  %v360 = vpop.f32.mrb[0].mxu0
  %v361 = vadd.f32 0.0, %v360
  %v362 = vpop.f32.mrb[0].mxu0
  %v363 = vadd.f32 0.0, %v362
  %364 = vmatprep.mubr.f32.mxu0 0.0
  %365 = vmatmul.mubr.f32.gmra.mrb[0].mxu0 %v94
  %v366 = vpop.f32.mrb[0].mxu0
  %v367 = vadd.f32 0.0, %v366
  %v368 = vpop.f32.mrb[0].mxu0
  %v369 = vadd.f32 0.0, %v368
  %370 = vmatprep.mubr.f32.mxu0 0.0
  %371 = vmatmul.mubr.f32.gmra.mrb[0].mxu0 %v97
  %v372 = vpop.f32.mrb[0].mxu0
  %v373 = vadd.f32 0.0, %v372
  %v374 = vpop.f32.mrb[0].mxu0
  %v375 = vadd.f32 0.0, %v374
  %376 = vmatprep.mubr.f32.mxu0 0.0
  %377 = vmatmul.mubr.f32.gmra.mrb[0].mxu0 %v100
  %v378 = vpop.f32.mrb[0].mxu0
  %v379 = vadd.f32 0.0, %v378
  %v380 = vpop.f32.mrb[0].mxu0
  %v381 = vadd.f32 0.0, %v380
  %382 = vmatprep.mubr.f32.mxu0 0.0
  %383 = vmatmul.mubr.f32.gmra.mrb[0].mxu0 %v103
  %v384 = vpop.f32.mrb[0].mxu0
  %v385 = vadd.f32 0.0, %v384
  %v386 = vpop.f32.mrb[0].mxu0
  %v387 = vadd.f32 0.0, %v386
  %388 = vmatprep.mubr.f32.mxu0 0.0
  %389 = vmatmul.mubr.f32.gmra.mrb[0].mxu0 %v106
  %v390 = vpop.f32.mrb[0].mxu0
  %v391 = vadd.f32 0.0, %v390
  %v392 = vpop.f32.mrb[0].mxu0
  %v393 = vadd.f32 0.0, %v392
  %394 = vmatprep.mubr.f32.mxu0 0.0
  %395 = vmatmul.mubr.f32.gmra.mrb[0].mxu0 %v109
  %v396 = vpop.f32.mrb[0].mxu0
  %v397 = vadd.f32 0.0, %v396
  %v398 = vpop.f32.mrb[0].mxu0
  %v399 = vadd.f32 0.0, %v398
  %400 = vmatprep.mubr.f32.mxu0 0.0
  %401 = vmatmul.mubr.f32.gmra.mrb[0].mxu0 %v112
  %v402 = vpop.f32.mrb[0].mxu0
  %v403 = vadd.f32 0.0, %v402
  %v404 = vpop.f32.mrb[0].mxu0
  %v405 = vadd.f32 0.0, %v404
  %406 = vmatprep.mubr.f32.mxu0 0.0
  %407 = vmatmul.mubr.f32.gmra.mrb[0].mxu0 %v115
  %v408 = vpop.f32.mrb[0].mxu0
  %v409 = vadd.f32 0.0, %v408
  %v410 = vpop.f32.mrb[0].mxu0
  %v411 = vadd.f32 0.0, %v410
  %412 = vmatprep.mubr.f32.mxu0 0.0
  %413 = vmatmul.mubr.f32.gmra.mrb[0].mxu0 %v118
  %v414 = vpop.f32.mrb[0].mxu0
  %v415 = vadd.f32 0.0, %v414
  %v416 = vpop.f32.mrb[0].mxu0
  %v417 = vadd.f32 0.0, %v416
  %418 = vmatprep.mubr.f32.mxu0 0.0
  %419 = vmatmul.mubr.f32.gmra.mrb[0].mxu0 %v121
  %v420 = vpop.f32.mrb[0].mxu0
  %v421 = vadd.f32 0.0, %v420
  %v422 = vpop.f32.mrb[0].mxu0
  %v423 = vadd.f32 0.0, %v422
  %424 = vmatprep.mubr.f32.mxu0 0.0
  %425 = vmatmul.mubr.f32.gmra.mrb[0].mxu0 %v124
  %v426 = vpop.f32.mrb[0].mxu0
  %v427 = vadd.f32 0.0, %v426
  %v428 = vpop.f32.mrb[0].mxu0
  %v429 = vadd.f32 0.0, %v428
  %430 = vmatprep.mubr.f32.mxu0 0.0
  %431 = vmatmul.mubr.f32.gmra.mrb[0].mxu0 %v127
  %v432 = vpop.f32.mrb[0].mxu0
  %v433 = vadd.f32 0.0, %v432
  %v434 = vpop.f32.mrb[0].mxu0
  %v435 = vadd.f32 0.0, %v434
  %436 = vmatprep.mubr.f32.mxu0 0.0
  %437 = vmatmul.mubr.f32.gmra.mrb[0].mxu0 %v130
  %v438 = vpop.f32.mrb[0].mxu0
  %v439 = vadd.f32 0.0, %v438
  %v440 = vpop.f32.mrb[0].mxu0
  %v441 = vadd.f32 0.0, %v440
  %442 = vmatprep.mubr.f32.mxu0 0.0
  %443 = vmatmul.mubr.f32.gmra.mrb[0].mxu0 %v133
  %v444 = vpop.f32.mrb[0].mxu0
  %v445 = vadd.f32 0.0, %v444
  %v446 = vpop.f32.mrb[0].mxu0
  %v447 = vadd.f32 0.0, %v446
  %448 = vmatprep.mubr.f32.mxu0 0.0
  %449 = vmatmul.mubr.f32.gmra.mrb[0].mxu0 %v136
  %v450 = vpop.f32.mrb[0].mxu0
  %v451 = vadd.f32 0.0, %v450
  %v452 = vpop.f32.mrb[0].mxu0
  %v453 = vadd.f32 0.0, %v452
  %454 = vmatprep.mubr.f32.mxu0 0.0
  %455 = vmatmul.mubr.f32.gmra.mrb[0].mxu0 %v139
  %v456 = vpop.f32.mrb[0].mxu0
  %v457 = vadd.f32 0.0, %v456
  %v458 = vpop.f32.mrb[0].mxu0
  %v459 = vadd.f32 0.0, %v458
  %460 = vmatprep.mubr.f32.mxu0 0.0
  %461 = vmatmul.mubr.f32.gmra.mrb[0].mxu0 %v142
  %v462 = vpop.f32.mrb[0].mxu0
  %v463 = vadd.f32 0.0, %v462
  %v464 = vpop.f32.mrb[0].mxu0
  %v465 = vadd.f32 0.0, %v464
  %466 = vmatprep.mubr.f32.mxu0 0.0
  %467 = vmatmul.mubr.f32.gmra.mrb[0].mxu0 %v145
  %v468 = vpop.f32.mrb[0].mxu0
  %v469 = vadd.f32 0.0, %v468
  %v470 = vpop.f32.mrb[0].mxu0
  %v471 = vadd.f32 0.0, %v470
  %472 = vmatprep.mubr.f32.mxu0 0.0
  %473 = vmatmul.mubr.f32.gmra.mrb[0].mxu0 %v148
  %v474 = vpop.f32.mrb[0].mxu0
  %v475 = vadd.f32 0.0, %v474
  %v476 = vpop.f32.mrb[0].mxu0
  %v477 = vadd.f32 0.0, %v476
  %478 = vmatprep.mubr.f32.mxu0 0.0
  %479 = vmatmul.mubr.f32.gmra.mrb[0].mxu0 %v151
  %v480 = vpop.f32.mrb[0].mxu0
  %v481 = vadd.f32 0.0, %v480
  %v482 = vpop.f32.mrb[0].mxu0
  %v483 = vadd.f32 0.0, %v482
  %484 = vmatprep.mubr.f32.mxu0 0.0
  %485 = vmatmul.mubr.f32.gmra.mrb[0].mxu0 %v154
  %v486 = vpop.f32.mrb[0].mxu0
  %v487 = vadd.f32 0.0, %v486
  %v488 = vpop.f32.mrb[0].mxu0
  %v489 = vadd.f32 0.0, %v488
  %490 = vmatprep.mubr.f32.mxu0 0.0
  %491 = vmatmul.mubr.f32.gmra.mrb[0].mxu0 %v157
  %v492 = vpop.f32.mrb[0].mxu0
  %v493 = vadd.f32 0.0, %v492
  %v494 = vpop.f32.mrb[0].mxu0
  %v495 = vadd.f32 0.0, %v494
  %496 = vmatprep.mubr.f32.mxu0 0.0
  %497 = vmatmul.mubr.f32.gmra.mrb[0].mxu0 %v160
  %v498 = vpop.f32.mrb[0].mxu0
  %v499 = vadd.f32 0.0, %v498
  %v500 = vpop.f32.mrb[0].mxu0
  %v501 = vadd.f32 0.0, %v500
  %502 = vmatprep.mubr.f32.mxu0 0.0
  %503 = vmatmul.mubr.f32.gmra.mrb[0].mxu0 %v163
  %v504 = vpop.f32.mrb[0].mxu0
  %v505 = vadd.f32 0.0, %v504
  %v506 = vpop.f32.mrb[0].mxu0
  %v507 = vadd.f32 0.0, %v506
  %508 = vmatprep.mubr.f32.mxu0 0.0
  %509 = vmatmul.mubr.f32.gmra.mrb[0].mxu0 %v166
  %v510 = vpop.f32.mrb[0].mxu0
  %v511 = vadd.f32 0.0, %v510
  %v512 = vpop.f32.mrb[0].mxu0
  %v513 = vadd.f32 0.0, %v512
  %514 = vmatprep.mubr.f32.mxu0 0.0
  %515 = vmatmul.mubr.f32.gmra.mrb[0].mxu0 %v169
  %v516 = vpop.f32.mrb[0].mxu0
  %v517 = vadd.f32 0.0, %v516
  %v518 = vpop.f32.mrb[0].mxu0
  %v519 = vadd.f32 0.0, %v518
  %520 = vmatprep.mubr.f32.mxu0 0.0
  %521 = vmatmul.mubr.f32.gmra.mrb[0].mxu0 %v172
  %v522 = vpop.f32.mrb[0].mxu0
  %v523 = vadd.f32 0.0, %v522
  %v524 = vpop.f32.mrb[0].mxu0
  %v525 = vadd.f32 0.0, %v524
  %526 = vdwg.mxu0
  %v527 = vxor.u32 %v337, 2147483648
  %v528 = vxor.u32 %v339, 2147483648
  %v529 = vxor.u32 %v343, 2147483648
  %v530 = vxor.u32 %v345, 2147483648
  %v531 = vxor.u32 %v349, 2147483648
  %v532 = vxor.u32 %v351, 2147483648
  %v533 = vxor.u32 %v355, 2147483648
  %v534 = vxor.u32 %v357, 2147483648
  %v535 = vxor.u32 %v361, 2147483648
  %v536 = vxor.u32 %v363, 2147483648
  %v537 = vxor.u32 %v367, 2147483648
  %v538 = vxor.u32 %v369, 2147483648
  %v539 = vxor.u32 %v373, 2147483648
  %v540 = vxor.u32 %v375, 2147483648
  %v541 = vxor.u32 %v379, 2147483648
  %v542 = vxor.u32 %v381, 2147483648
  %v543 = vxor.u32 %v385, 2147483648
  %v544 = vxor.u32 %v387, 2147483648
  %v545 = vxor.u32 %v391, 2147483648
  %v546 = vxor.u32 %v393, 2147483648
  %v547 = vxor.u32 %v397, 2147483648
  %v548 = vxor.u32 %v399, 2147483648
  %v549 = vxor.u32 %v403, 2147483648
  %v550 = vxor.u32 %v405, 2147483648
  %v551 = vxor.u32 %v409, 2147483648
  %v552 = vxor.u32 %v411, 2147483648
  %v553 = vxor.u32 %v415, 2147483648
  %v554 = vxor.u32 %v417, 2147483648
  %v555 = vxor.u32 %v421, 2147483648
  %v556 = vxor.u32 %v423, 2147483648
  %v557 = vxor.u32 %v427, 2147483648
  %v558 = vxor.u32 %v429, 2147483648
  %v559 = vxor.u32 %v433, 2147483648
  %v560 = vxor.u32 %v435, 2147483648
  %v561 = vxor.u32 %v439, 2147483648
  %v562 = vxor.u32 %v441, 2147483648
  %v563 = vxor.u32 %v445, 2147483648
  %v564 = vxor.u32 %v447, 2147483648
  %v565 = vxor.u32 %v451, 2147483648
  %v566 = vxor.u32 %v453, 2147483648
  %v567 = vxor.u32 %v457, 2147483648
  %v568 = vxor.u32 %v459, 2147483648
  %v569 = vxor.u32 %v463, 2147483648
  %v570 = vxor.u32 %v465, 2147483648
  %v571 = vxor.u32 %v469, 2147483648
  %v572 = vxor.u32 %v471, 2147483648
  %v573 = vxor.u32 %v475, 2147483648
  %v574 = vxor.u32 %v477, 2147483648
  %v575 = vxor.u32 %v481, 2147483648
  %v576 = vxor.u32 %v483, 2147483648
  %v577 = vxor.u32 %v487, 2147483648
  %v578 = vxor.u32 %v489, 2147483648
  %v579 = vxor.u32 %v493, 2147483648
  %v580 = vxor.u32 %v495, 2147483648
  %v581 = vxor.u32 %v499, 2147483648
  %v582 = vxor.u32 %v501, 2147483648
  %v583 = vxor.u32 %v505, 2147483648
  %v584 = vxor.u32 %v507, 2147483648
  %v585 = vxor.u32 %v511, 2147483648
  %v586 = vxor.u32 %v513, 2147483648
  %v587 = vxor.u32 %v517, 2147483648
  %v588 = vxor.u32 %v519, 2147483648
  %v589 = vxor.u32 %v523, 2147483648
  %v590 = vxor.u32 %v525, 2147483648
  %v591 = vmul.f32 %v527, 1.442695
  %v592 = vpow.pop %v591
  %v593 = vmul.f32 %v528, 1.442695
  %v594 = vpow.pop %v593
  %v595 = vmul.f32 %v529, 1.442695
  %v596 = vpow.pop %v595
  %v597 = vmul.f32 %v530, 1.442695
  %v598 = vpow.pop %v597
  %v599 = vmul.f32 %v531, 1.442695
  %v600 = vpow.pop %v599
  %v601 = vmul.f32 %v532, 1.442695
  %v602 = vpow.pop %v601
  %v603 = vmul.f32 %v533, 1.442695
  %v604 = vpow.pop %v603
  %v605 = vmul.f32 %v534, 1.442695
  %v606 = vpow.pop %v605
  %v607 = vmul.f32 %v535, 1.442695
  %v608 = vpow.pop %v607
  %v609 = vmul.f32 %v536, 1.442695
  %v610 = vpow.pop %v609
  %v611 = vmul.f32 %v537, 1.442695
  %v612 = vpow.pop %v611
  %v613 = vmul.f32 %v538, 1.442695
  %v614 = vpow.pop %v613
  %v615 = vmul.f32 %v539, 1.442695
  %v616 = vpow.pop %v615
  %v617 = vmul.f32 %v540, 1.442695
  %v618 = vpow.pop %v617
  %v619 = vmul.f32 %v541, 1.442695
  %v620 = vpow.pop %v619
  %v621 = vmul.f32 %v542, 1.442695
  %v622 = vpow.pop %v621
  %v623 = vmul.f32 %v543, 1.442695
  %v624 = vpow.pop %v623
  %v625 = vmul.f32 %v544, 1.442695
  %v626 = vpow.pop %v625
  %v627 = vmul.f32 %v545, 1.442695
  %v628 = vpow.pop %v627
  %v629 = vmul.f32 %v546, 1.442695
  %v630 = vpow.pop %v629
  %v631 = vmul.f32 %v547, 1.442695
  %v632 = vpow.pop %v631
  %v633 = vmul.f32 %v548, 1.442695
  %v634 = vpow.pop %v633
  %v635 = vmul.f32 %v549, 1.442695
  %v636 = vpow.pop %v635
  %v637 = vmul.f32 %v550, 1.442695
  %v638 = vpow.pop %v637
  %v639 = vmul.f32 %v551, 1.442695
  %v640 = vpow.pop %v639
  %v641 = vmul.f32 %v552, 1.442695
  %v642 = vpow.pop %v641
  %v643 = vmul.f32 %v553, 1.442695
  %v644 = vpow.pop %v643
  %v645 = vmul.f32 %v554, 1.442695
  %v646 = vpow.pop %v645
  %v647 = vmul.f32 %v555, 1.442695
  %v648 = vpow.pop %v647
  %v649 = vmul.f32 %v556, 1.442695
  %v650 = vpow.pop %v649
  %v651 = vmul.f32 %v557, 1.442695
  %v652 = vpow.pop %v651
  %v653 = vmul.f32 %v558, 1.442695
  %v654 = vpow.pop %v653
  %v655 = vmul.f32 %v559, 1.442695
  %v656 = vpow.pop %v655
  %v657 = vmul.f32 %v560, 1.442695
  %v658 = vpow.pop %v657
  %v659 = vmul.f32 %v561, 1.442695
  %v660 = vpow.pop %v659
  %v661 = vmul.f32 %v562, 1.442695
  %v662 = vpow.pop %v661
  %v663 = vmul.f32 %v563, 1.442695
  %v664 = vpow.pop %v663
  %v665 = vmul.f32 %v564, 1.442695
  %v666 = vpow.pop %v665
  %v667 = vmul.f32 %v565, 1.442695
  %v668 = vpow.pop %v667
  %v669 = vmul.f32 %v566, 1.442695
  %v670 = vpow.pop %v669
  %v671 = vmul.f32 %v567, 1.442695
  %v672 = vpow.pop %v671
  %v673 = vmul.f32 %v568, 1.442695
  %v674 = vpow.pop %v673
  %v675 = vmul.f32 %v569, 1.442695
  %v676 = vpow.pop %v675
  %v677 = vmul.f32 %v570, 1.442695
  %v678 = vpow.pop %v677
  %v679 = vmul.f32 %v571, 1.442695
  %v680 = vpow.pop %v679
  %v681 = vmul.f32 %v572, 1.442695
  %v682 = vpow.pop %v681
  %v683 = vmul.f32 %v573, 1.442695
  %v684 = vpow.pop %v683
  %v685 = vmul.f32 %v574, 1.442695
  %v686 = vpow.pop %v685
  %v687 = vmul.f32 %v575, 1.442695
  %v688 = vpow.pop %v687
  %v689 = vmul.f32 %v576, 1.442695
  %v690 = vpow.pop %v689
  %v691 = vmul.f32 %v577, 1.442695
  %v692 = vpow.pop %v691
  %v693 = vmul.f32 %v578, 1.442695
  %v694 = vpow.pop %v693
  %v695 = vmul.f32 %v579, 1.442695
  %v696 = vpow.pop %v695
  %v697 = vmul.f32 %v580, 1.442695
  %v698 = vpow.pop %v697
  %v699 = vmul.f32 %v581, 1.442695
  %v700 = vpow.pop %v699
  %v701 = vmul.f32 %v582, 1.442695
  %v702 = vpow.pop %v701
  %v703 = vmul.f32 %v583, 1.442695
  %v704 = vpow.pop %v703
  %v705 = vmul.f32 %v584, 1.442695
  %v706 = vpow.pop %v705
  %v707 = vmul.f32 %v585, 1.442695
  %v708 = vpow.pop %v707
  %v709 = vmul.f32 %v586, 1.442695
  %v710 = vpow.pop %v709
  %v711 = vmul.f32 %v587, 1.442695
  %v712 = vpow.pop %v711
  %v713 = vmul.f32 %v588, 1.442695
  %v714 = vpow.pop %v713
  %v715 = vmul.f32 %v589, 1.442695
  %v716 = vpow.pop %v715
  %v717 = vmul.f32 %v590, 1.442695
  %v718 = vpow.pop %v717
  %v719 = vadd.f32 %v592, 1.0
  %v720 = vadd.f32 %v594, 1.0
  %v721 = vadd.f32 %v596, 1.0
  %v722 = vadd.f32 %v598, 1.0
  %v723 = vadd.f32 %v600, 1.0
  %v724 = vadd.f32 %v602, 1.0
  %v725 = vadd.f32 %v604, 1.0
  %v726 = vadd.f32 %v606, 1.0
  %v727 = vadd.f32 %v608, 1.0
  %v728 = vadd.f32 %v610, 1.0
  %v729 = vadd.f32 %v612, 1.0
  %v730 = vadd.f32 %v614, 1.0
  %v731 = vadd.f32 %v616, 1.0
  %v732 = vadd.f32 %v618, 1.0
  %v733 = vadd.f32 %v620, 1.0
  %v734 = vadd.f32 %v622, 1.0
  %v735 = vadd.f32 %v624, 1.0
  %v736 = vadd.f32 %v626, 1.0
  %v737 = vadd.f32 %v628, 1.0
  %v738 = vadd.f32 %v630, 1.0
  %v739 = vadd.f32 %v632, 1.0
  %v740 = vadd.f32 %v634, 1.0
  %v741 = vadd.f32 %v636, 1.0
  %v742 = vadd.f32 %v638, 1.0
  %v743 = vadd.f32 %v640, 1.0
  %v744 = vadd.f32 %v642, 1.0
  %v745 = vadd.f32 %v644, 1.0
  %v746 = vadd.f32 %v646, 1.0
  %v747 = vadd.f32 %v648, 1.0
  %v748 = vadd.f32 %v650, 1.0
  %v749 = vadd.f32 %v652, 1.0
  %v750 = vadd.f32 %v654, 1.0
  %v751 = vadd.f32 %v656, 1.0
  %v752 = vadd.f32 %v658, 1.0
  %v753 = vadd.f32 %v660, 1.0
  %v754 = vadd.f32 %v662, 1.0
  %v755 = vadd.f32 %v664, 1.0
  %v756 = vadd.f32 %v666, 1.0
  %v757 = vadd.f32 %v668, 1.0
  %v758 = vadd.f32 %v670, 1.0
  %v759 = vadd.f32 %v672, 1.0
  %v760 = vadd.f32 %v674, 1.0
  %v761 = vadd.f32 %v676, 1.0
  %v762 = vadd.f32 %v678, 1.0
  %v763 = vadd.f32 %v680, 1.0
  %v764 = vadd.f32 %v682, 1.0
  %v765 = vadd.f32 %v684, 1.0
  %v766 = vadd.f32 %v686, 1.0
  %v767 = vadd.f32 %v688, 1.0
  %v768 = vadd.f32 %v690, 1.0
  %v769 = vadd.f32 %v692, 1.0
  %v770 = vadd.f32 %v694, 1.0
  %v771 = vadd.f32 %v696, 1.0
  %v772 = vadd.f32 %v698, 1.0
  %v773 = vadd.f32 %v700, 1.0
  %v774 = vadd.f32 %v702, 1.0
  %v775 = vadd.f32 %v704, 1.0
  %v776 = vadd.f32 %v706, 1.0
  %v777 = vadd.f32 %v708, 1.0
  %v778 = vadd.f32 %v710, 1.0
  %v779 = vadd.f32 %v712, 1.0
  %v780 = vadd.f32 %v714, 1.0
  %v781 = vadd.f32 %v716, 1.0
  %v782 = vadd.f32 %v718, 1.0
  %v783 = vrcp.pop %v719
  %v784 = vmul.f32 1.0, %v783
  %v785 = vrcp.pop %v720
  %v786 = vmul.f32 1.0, %v785
  %v787 = vrcp.pop %v721
  %v788 = vmul.f32 1.0, %v787
  %v789 = vrcp.pop %v722
  %v790 = vmul.f32 1.0, %v789
  %v791 = vrcp.pop %v723
  %v792 = vmul.f32 1.0, %v791
  %v793 = vrcp.pop %v724
  %v794 = vmul.f32 1.0, %v793
  %v795 = vrcp.pop %v725
  %v796 = vmul.f32 1.0, %v795
  %v797 = vrcp.pop %v726
  %v798 = vmul.f32 1.0, %v797
  %v799 = vrcp.pop %v727
  %v800 = vmul.f32 1.0, %v799
  %v801 = vrcp.pop %v728
  %v802 = vmul.f32 1.0, %v801
  %v803 = vrcp.pop %v729
  %v804 = vmul.f32 1.0, %v803
  %v805 = vrcp.pop %v730
  %v806 = vmul.f32 1.0, %v805
  %v807 = vrcp.pop %v731
  %v808 = vmul.f32 1.0, %v807
  %v809 = vrcp.pop %v732
  %v810 = vmul.f32 1.0, %v809
  %v811 = vrcp.pop %v733
  %v812 = vmul.f32 1.0, %v811
  %v813 = vrcp.pop %v734
  %v814 = vmul.f32 1.0, %v813
  %v815 = vrcp.pop %v735
  %v816 = vmul.f32 1.0, %v815
  %v817 = vrcp.pop %v736
  %v818 = vmul.f32 1.0, %v817
  %v819 = vrcp.pop %v737
  %v820 = vmul.f32 1.0, %v819
  %v821 = vrcp.pop %v738
  %v822 = vmul.f32 1.0, %v821
  %v823 = vrcp.pop %v739
  %v824 = vmul.f32 1.0, %v823
  %v825 = vrcp.pop %v740
  %v826 = vmul.f32 1.0, %v825
  %v827 = vrcp.pop %v741
  %v828 = vmul.f32 1.0, %v827
  %v829 = vrcp.pop %v742
  %v830 = vmul.f32 1.0, %v829
  %v831 = vrcp.pop %v743
  %v832 = vmul.f32 1.0, %v831
  %v833 = vrcp.pop %v744
  %v834 = vmul.f32 1.0, %v833
  %v835 = vrcp.pop %v745
  %v836 = vmul.f32 1.0, %v835
  %v837 = vrcp.pop %v746
  %v838 = vmul.f32 1.0, %v837
  %v839 = vrcp.pop %v747
  %v840 = vmul.f32 1.0, %v839
  %v841 = vrcp.pop %v748
  %v842 = vmul.f32 1.0, %v841
  %v843 = vrcp.pop %v749
  %v844 = vmul.f32 1.0, %v843
  %v845 = vrcp.pop %v750
  %v846 = vmul.f32 1.0, %v845
  %v847 = vrcp.pop %v751
  %v848 = vmul.f32 1.0, %v847
  %v849 = vrcp.pop %v752
  %v850 = vmul.f32 1.0, %v849
  %v851 = vrcp.pop %v753
  %v852 = vmul.f32 1.0, %v851
  %v853 = vrcp.pop %v754
  %v854 = vmul.f32 1.0, %v853
  %v855 = vrcp.pop %v755
  %v856 = vmul.f32 1.0, %v855
  %v857 = vrcp.pop %v756
  %v858 = vmul.f32 1.0, %v857
  %v859 = vrcp.pop %v757
  %v860 = vmul.f32 1.0, %v859
  %v861 = vrcp.pop %v758
  %v862 = vmul.f32 1.0, %v861
  %v863 = vrcp.pop %v759
  %v864 = vmul.f32 1.0, %v863
  %v865 = vrcp.pop %v760
  %v866 = vmul.f32 1.0, %v865
  %v867 = vrcp.pop %v761
  %v868 = vmul.f32 1.0, %v867
  %v869 = vrcp.pop %v762
  %v870 = vmul.f32 1.0, %v869
  %v871 = vrcp.pop %v763
  %v872 = vmul.f32 1.0, %v871
  %v873 = vrcp.pop %v764
  %v874 = vmul.f32 1.0, %v873
  %v875 = vrcp.pop %v765
  %v876 = vmul.f32 1.0, %v875
  %v877 = vrcp.pop %v766
  %v878 = vmul.f32 1.0, %v877
  %v879 = vrcp.pop %v767
  %v880 = vmul.f32 1.0, %v879
  %v881 = vrcp.pop %v768
  %v882 = vmul.f32 1.0, %v881
  %v883 = vrcp.pop %v769
  %v884 = vmul.f32 1.0, %v883
  %v885 = vrcp.pop %v770
  %v886 = vmul.f32 1.0, %v885
  %v887 = vrcp.pop %v771
  %v888 = vmul.f32 1.0, %v887
  %v889 = vrcp.pop %v772
  %v890 = vmul.f32 1.0, %v889
  %v891 = vrcp.pop %v773
  %v892 = vmul.f32 1.0, %v891
  %v893 = vrcp.pop %v774
  %v894 = vmul.f32 1.0, %v893
  %v895 = vrcp.pop %v775
  %v896 = vmul.f32 1.0, %v895
  %v897 = vrcp.pop %v776
  %v898 = vmul.f32 1.0, %v897
  %v899 = vrcp.pop %v777
  %v900 = vmul.f32 1.0, %v899
  %v901 = vrcp.pop %v778
  %v902 = vmul.f32 1.0, %v901
  %v903 = vrcp.pop %v779
  %v904 = vmul.f32 1.0, %v903
  %v905 = vrcp.pop %v780
  %v906 = vmul.f32 1.0, %v905
  %v907 = vrcp.pop %v781
  %v908 = vmul.f32 1.0, %v907
  %v909 = vrcp.pop %v782
  %v910 = vmul.f32 1.0, %v909
  %911 = vst [vmem:[%s2] sm:$0xff] %v784
  %912 = vst [vmem:[%s2 + $0x8] sm:$0xff] %v786
  %913 = vst [vmem:[%s2 + $0x10] sm:$0xff] %v788
  %914 = vst [vmem:[%s2 + $0x18] sm:$0xff] %v790
  %915 = vst [vmem:[%s2 + $0x20] sm:$0xff] %v792
  %916 = vst [vmem:[%s2 + $0x28] sm:$0xff] %v794
  %917 = vst [vmem:[%s2 + $0x30] sm:$0xff] %v796
  %918 = vst [vmem:[%s2 + $0x38] sm:$0xff] %v798
  %919 = vst [vmem:[%s2 + $0x40] sm:$0xff] %v800
  %920 = vst [vmem:[%s2 + $0x48] sm:$0xff] %v802
  %921 = vst [vmem:[%s2 + $0x50] sm:$0xff] %v804
  %922 = vst [vmem:[%s2 + $0x58] sm:$0xff] %v806
  %923 = vst [vmem:[%s2 + $0x60] sm:$0xff] %v808
  %924 = vst [vmem:[%s2 + $0x68] sm:$0xff] %v810
  %925 = vst [vmem:[%s2 + $0x70] sm:$0xff] %v812
  %926 = vst [vmem:[%s2 + $0x78] sm:$0xff] %v814
  %927 = vst [vmem:[%s2 + $0x80] sm:$0xff] %v816
  %928 = vst [vmem:[%s2 + $0x88] sm:$0xff] %v818
  %929 = vst [vmem:[%s2 + $0x90] sm:$0xff] %v820
  %930 = vst [vmem:[%s2 + $0x98] sm:$0xff] %v822
  %931 = vst [vmem:[%s2 + $0xa0] sm:$0xff] %v824
  %932 = vst [vmem:[%s2 + $0xa8] sm:$0xff] %v826
  %933 = vst [vmem:[%s2 + $0xb0] sm:$0xff] %v828
  %934 = vst [vmem:[%s2 + $0xb8] sm:$0xff] %v830
  %935 = vst [vmem:[%s2 + $0xc0] sm:$0xff] %v832
  %936 = vst [vmem:[%s2 + $0xc8] sm:$0xff] %v834
  %937 = vst [vmem:[%s2 + $0xd0] sm:$0xff] %v836
  %938 = vst [vmem:[%s2 + $0xd8] sm:$0xff] %v838
  %939 = vst [vmem:[%s2 + $0xe0] sm:$0xff] %v840
  %940 = vst [vmem:[%s2 + $0xe8] sm:$0xff] %v842
  %941 = vst [vmem:[%s2 + $0xf0] sm:$0xff] %v844
  %942 = vst [vmem:[%s2 + $0xf8] sm:$0xff] %v846
  %943 = vst [vmem:[%s2 + $0x100] sm:$0xff] %v848
  %944 = vst [vmem:[%s2 + $0x108] sm:$0xff] %v850
  %945 = vst [vmem:[%s2 + $0x110] sm:$0xff] %v852
  %946 = vst [vmem:[%s2 + $0x118] sm:$0xff] %v854
  %947 = vst [vmem:[%s2 + $0x120] sm:$0xff] %v856
  %948 = vst [vmem:[%s2 + $0x128] sm:$0xff] %v858
  %949 = vst [vmem:[%s2 + $0x130] sm:$0xff] %v860
  %950 = vst [vmem:[%s2 + $0x138] sm:$0xff] %v862
  %951 = vst [vmem:[%s2 + $0x140] sm:$0xff] %v864
  %952 = vst [vmem:[%s2 + $0x148] sm:$0xff] %v866
  %953 = vst [vmem:[%s2 + $0x150] sm:$0xff] %v868
  %954 = vst [vmem:[%s2 + $0x158] sm:$0xff] %v870
  %955 = vst [vmem:[%s2 + $0x160] sm:$0xff] %v872
  %956 = vst [vmem:[%s2 + $0x168] sm:$0xff] %v874
  %957 = vst [vmem:[%s2 + $0x170] sm:$0xff] %v876
  %958 = vst [vmem:[%s2 + $0x178] sm:$0xff] %v878
  %959 = vst [vmem:[%s2 + $0x180] sm:$0xff] %v880
  %960 = vst [vmem:[%s2 + $0x188] sm:$0xff] %v882
  %961 = vst [vmem:[%s2 + $0x190] sm:$0xff] %v884
  %962 = vst [vmem:[%s2 + $0x198] sm:$0xff] %v886
  %963 = vst [vmem:[%s2 + $0x1a0] sm:$0xff] %v888
  %964 = vst [vmem:[%s2 + $0x1a8] sm:$0xff] %v890
  %965 = vst [vmem:[%s2 + $0x1b0] sm:$0xff] %v892
  %966 = vst [vmem:[%s2 + $0x1b8] sm:$0xff] %v894
  %967 = vst [vmem:[%s2 + $0x1c0] sm:$0xff] %v896
  %968 = vst [vmem:[%s2 + $0x1c8] sm:$0xff] %v898
  %969 = vst [vmem:[%s2 + $0x1d0] sm:$0xff] %v900
  %970 = vst [vmem:[%s2 + $0x1d8] sm:$0xff] %v902
  %971 = vst [vmem:[%s2 + $0x1e0] sm:$0xff] %v904
  %972 = vst [vmem:[%s2 + $0x1e8] sm:$0xff] %v906
  %973 = vst [vmem:[%s2 + $0x1f0] sm:$0xff] %v908
  %974 = vst [vmem:[%s2 + $0x1f8] sm:$0xff] %v910
  // Predicated region
  $region10: #{inner_product_decoder.1} parent=0 // pred_check
    _
  $region11: #{inner_product_decoder.1} parent=0 // pred_check_branch
    %976 = sbr.rel (0) target = $region13
  $region12: #{inner_product_decoder.1} parent=0 // pred_region
    _
  $region13: #{inner_product_decoder.1} parent=0 // pred_fallthru
    _
  // Predicated region
  $region14: #{inner_product_decoder.1} parent=0 // pred_check
    _
  $region15: #{inner_product_decoder.1} parent=0 // pred_check_branch
    %978 = sbr.rel (0) target = $region17
  $region16: #{inner_product_decoder.1} parent=0 // pred_region
    _
  $region17: #{inner_product_decoder.1} parent=0 // pred_fallthru
    _

</llo_original>
